<compile_context>
chip_gen: v7x
topology: tpu7x:2x2x1
jax: 0.10.0
libtpu: 0.0.40
codegen_flags: <defaults>
</compile_context>

<pallas_src>
import functools

import jax
import jax.numpy as jnp
import numpy as np
from jax.experimental import pallas as pl
from jax.experimental.pallas import tpu as pltpu


def _round_up(x, m):
    return ((x + m - 1) // m) * m


# ---------------------------------------------------------------------------
# Kernel A: transposed layout, batch on lanes.
#   x0_ref : (D, TB)  X_0 block
#   w_ref  : (D, L)   stacked per-layer weights (w_l in column l)
#   b_ref  : (D, L)   stacked per-layer biases
#   out_ref: (D, TB)  X_{num_layers} block
# ---------------------------------------------------------------------------
def crossnet_kernel_dxb(x0_ref, w_ref, b_ref, out_ref, *, num_layers):
    x0 = x0_ref[...].astype(jnp.float32)      # (D, TB)
    w = w_ref[...].astype(jnp.float32)        # (D, L)
    bias = b_ref[...].astype(jnp.float32)     # (D, L)

    xi = x0
    for l in range(num_layers):               # small compile-time constant -> unroll
        wl = w[:, l:l + 1]                     # (D, 1)
        bl = bias[:, l:l + 1]                  # (D, 1)
        # s[b] = X_i[:, b] . w_l  (sublane-axis reduction)
        s = jnp.sum(xi * wl, axis=0, keepdims=True)   # (1, TB)
        # X_{l+1} = X_i + (s * X_0 + bias_l)
        xi = xi + s * x0 + bl

    out_ref[...] = xi.astype(out_ref.dtype)


# ---------------------------------------------------------------------------
# Kernel B: natural layout, features on lanes (used when D % 128 == 0).
#   x0_ref : (TB, D)  X_0 block
#   w_ref  : (L, D)   stacked per-layer weights (w_l in row l)
#   b_ref  : (L, D)   stacked per-layer biases
#   out_ref: (TB, D)  X_{num_layers} block
# ---------------------------------------------------------------------------
def crossnet_kernel_bxd(x0_ref, w_ref, b_ref, out_ref, *, num_layers):
    x0 = x0_ref[...].astype(jnp.float32)      # (TB, D)
    w = w_ref[...].astype(jnp.float32)        # (L, D)
    bias = b_ref[...].astype(jnp.float32)     # (L, D)

    xi = x0
    for l in range(num_layers):
        wl = w[l:l + 1, :]                     # (1, D)
        bl = bias[l:l + 1, :]                  # (1, D)
        # s[b] = X_i[b, :] . w_l  (lane-axis reduction)
        s = jnp.sum(xi * wl, axis=1, keepdims=True)   # (TB, 1)
        xi = xi + s * x0 + bl

    out_ref[...] = xi.astype(out_ref.dtype)


def crossnet_pallas(X0, weights, biases, *, block_b=512,
                    block_bytes=2 * 1024 * 1024):
    """Fused CrossNet forward.

    X0:      (B, D)  input
    weights: (L, D)  per-layer Linear(input_dim, 1) weights
    biases:  (L, D)  per-layer biases
    returns: (B, D)
    """
    B, D = X0.shape
    L, Dw = weights.shape
    assert Dw == D and biases.shape == (L, D)

    if D % 128 == 0:
        # ---- Natural (B, D) layout: lane-dense features, no transposes. ----
        if B > 8:
            max_tb = max(8, ((block_bytes // (4 * D)) // 8) * 8)
            TB = min(block_b, _round_up(B, 8), max_tb)
            TB = max(8, TB - (TB % 8))
        else:
            TB = B                              # full-array block is legal
        Bp = _round_up(B, TB)
        x0 = X0 if Bp == B else jnp.pad(X0, ((0, Bp - B), (0, 0)))

        out = pl.pallas_call(
            functools.partial(crossnet_kernel_bxd, num_layers=L),
            out_shape=jax.ShapeDtypeStruct((Bp, D), X0.dtype),
            grid=(Bp // TB,),
            in_specs=[
                pl.BlockSpec((TB, D), lambda i: (i, 0)),   # X_0 batch block
                pl.BlockSpec((L, D), lambda i: (0, 0)),    # weights (resident)
                pl.BlockSpec((L, D), lambda i: (0, 0)),    # biases  (resident)
            ],
            out_specs=pl.BlockSpec((TB, D), lambda i: (i, 0)),
            compiler_params=pltpu.CompilerParams(
                dimension_semantics=("parallel",)),
        )(x0, weights, biases)
        return out[:B]

    # ---- Transposed (D, B) layout: batch rides the lanes (small D path). ----
    if B >= 128:
        max_tb = max(128, ((block_bytes // (4 * D)) // 128) * 128)
        TB = min(block_b, _round_up(B, 128), max_tb)
        TB = max(128, TB - (TB % 128))
    else:
        TB = B                                  # full-array block is legal
    Bp = _round_up(B, TB)

    x0t = X0.T                                  # (D, B) layout plumbing
    if Bp != B:
        x0t = jnp.pad(x0t, ((0, 0), (0, Bp - B)))
    wT = weights.T                              # (D, L)
    bT = biases.T                               # (D, L)

    out_t = pl.pallas_call(
        functools.partial(crossnet_kernel_dxb, num_layers=L),
        out_shape=jax.ShapeDtypeStruct((D, Bp), X0.dtype),
        grid=(Bp // TB,),
        in_specs=[
            pl.BlockSpec((D, TB), lambda i: (0, i)),       # X_0 batch block
            pl.BlockSpec((D, L), lambda i: (0, 0)),        # weights (resident)
            pl.BlockSpec((D, L), lambda i: (0, 0)),        # biases  (resident)
        ],
        out_specs=pl.BlockSpec((D, TB), lambda i: (0, i)),
        compiler_params=pltpu.CompilerParams(
            dimension_semantics=("parallel",)),
    )(x0t, wT, bT)

    return out_t[:, :B].T


# ---------------------------------------------------------------------------
# Pure-JAX reference mirroring the PyTorch module line by line.
# ---------------------------------------------------------------------------
def crossnet_ref(X0, weights, biases):
    Xi = X0
    for l in range(weights.shape[0]):
        s = Xi @ weights[l]                          # Linear(input_dim, 1, bias=False)
        interaction = s[:, None] * X0 + biases[l]    # weight(X_i) * X_0 + bias
        Xi = Xi + interaction
    return Xi


if __name__ == "__main__":
    num_layers = 3
    key = jax.random.PRNGKey(0)

    # (batch, input_dim) configs: module-style small shape, a lane-dense
    # multi-block batch with small D (transposed path), and a D%128==0 shape
    # that exercises the natural-layout path.
    configs = [(2, 32), (256, 32), (256, 128)]

    for batch, input_dim in configs:
        key, k_w, k_b, k_x = jax.random.split(key, 4)
        weights = 0.1 * jax.random.normal(k_w, (num_layers, input_dim), jnp.float32)
        biases = 0.1 * jax.random.normal(k_b, (num_layers, input_dim), jnp.float32)
        X0 = jax.random.normal(k_x, (batch, input_dim), jnp.float32)

        out = crossnet_pallas(X0, weights, biases)
        out = jax.block_until_ready(out)

        ref = crossnet_ref(X0, weights, biases)
        np.testing.assert_allclose(np.asarray(out), np.asarray(ref),
                                   rtol=1e-5, atol=1e-5)
        assert out.shape == (batch, input_dim)

    print("KERNEL_OK")
</pallas_src>

<mosaic_0001>
module attributes {stable_mosaic.version = 11 : i64} {
  func.func @crossnet_kernel_dxb(%arg0: i32, %arg1: memref<32x2xf32, #tpu.memory_space<vmem>>, %arg2: memref<32x3xf32, #tpu.memory_space<vmem>>, %arg3: memref<32x3xf32, #tpu.memory_space<vmem>>, %arg4: memref<32x2xf32, #tpu.memory_space<vmem>>) attributes {dimension_semantics = [#tpu.dimension_semantics<parallel>], iteration_bounds = array<i64: 1>, scalar_prefetch = 0 : i64, scratch_operands = 0 : i64, tpu.core_type = #tpu.core_type<tc>, window_params = [{transform_indices = @transform_0, window_bounds = array<i64: 32, 2>}, {pipeline_mode = #tpu.pipeline_mode<synchronous>, transform_indices = @transform_1, window_bounds = array<i64: 32, 3>}, {pipeline_mode = #tpu.pipeline_mode<synchronous>, transform_indices = @transform_2, window_bounds = array<i64: 32, 3>}, {transform_indices = @transform_3, window_bounds = array<i64: 32, 2>}]} {
    %c0 = arith.constant 0 : index
    %c0_0 = arith.constant 0 : index
    %0 = vector.load %arg1[%c0, %c0_0] : memref<32x2xf32, #tpu.memory_space<vmem>>, vector<32x2xf32>
    %c0_1 = arith.constant 0 : index
    %c0_2 = arith.constant 0 : index
    %1 = vector.load %arg2[%c0_1, %c0_2] : memref<32x3xf32, #tpu.memory_space<vmem>>, vector<32x3xf32>
    %c0_3 = arith.constant 0 : index
    %c0_4 = arith.constant 0 : index
    %2 = vector.load %arg3[%c0_3, %c0_4] : memref<32x3xf32, #tpu.memory_space<vmem>>, vector<32x3xf32>
    %3 = vector.extract_strided_slice %1 {offsets = [0, 0], sizes = [32, 1], strides = [1, 1]} : vector<32x3xf32> to vector<32x1xf32>
    %4 = vector.extract_strided_slice %2 {offsets = [0, 0], sizes = [32, 1], strides = [1, 1]} : vector<32x3xf32> to vector<32x1xf32>
    %5 = vector.broadcast %3 : vector<32x1xf32> to vector<32x2xf32>
    %6 = arith.mulf %0, %5 : vector<32x2xf32>
    %cst = arith.constant dense<0.000000e+00> : vector<2xf32>
    %7 = vector.multi_reduction <add>, %6, %cst [0] : vector<32x2xf32> to vector<2xf32>
    %8 = vector.shape_cast %7 : vector<2xf32> to vector<1x2xf32>
    %9 = vector.broadcast %8 : vector<1x2xf32> to vector<32x2xf32>
    %10 = arith.mulf %9, %0 : vector<32x2xf32>
    %11 = arith.addf %0, %10 : vector<32x2xf32>
    %12 = vector.broadcast %4 : vector<32x1xf32> to vector<32x2xf32>
    %13 = arith.addf %11, %12 : vector<32x2xf32>
    %14 = vector.extract_strided_slice %1 {offsets = [0, 1], sizes = [32, 1], strides = [1, 1]} : vector<32x3xf32> to vector<32x1xf32>
    %15 = vector.extract_strided_slice %2 {offsets = [0, 1], sizes = [32, 1], strides = [1, 1]} : vector<32x3xf32> to vector<32x1xf32>
    %16 = vector.broadcast %14 : vector<32x1xf32> to vector<32x2xf32>
    %17 = arith.mulf %13, %16 : vector<32x2xf32>
    %cst_5 = arith.constant dense<0.000000e+00> : vector<2xf32>
    %18 = vector.multi_reduction <add>, %17, %cst_5 [0] : vector<32x2xf32> to vector<2xf32>
    %19 = vector.shape_cast %18 : vector<2xf32> to vector<1x2xf32>
    %20 = vector.broadcast %19 : vector<1x2xf32> to vector<32x2xf32>
    %21 = arith.mulf %20, %0 : vector<32x2xf32>
    %22 = arith.addf %13, %21 : vector<32x2xf32>
    %23 = vector.broadcast %15 : vector<32x1xf32> to vector<32x2xf32>
    %24 = arith.addf %22, %23 : vector<32x2xf32>
    %25 = vector.extract_strided_slice %1 {offsets = [0, 2], sizes = [32, 1], strides = [1, 1]} : vector<32x3xf32> to vector<32x1xf32>
    %26 = vector.extract_strided_slice %2 {offsets = [0, 2], sizes = [32, 1], strides = [1, 1]} : vector<32x3xf32> to vector<32x1xf32>
    %27 = vector.broadcast %25 : vector<32x1xf32> to vector<32x2xf32>
    %28 = arith.mulf %24, %27 : vector<32x2xf32>
    %cst_6 = arith.constant dense<0.000000e+00> : vector<2xf32>
    %29 = vector.multi_reduction <add>, %28, %cst_6 [0] : vector<32x2xf32> to vector<2xf32>
    %30 = vector.shape_cast %29 : vector<2xf32> to vector<1x2xf32>
    %31 = vector.broadcast %30 : vector<1x2xf32> to vector<32x2xf32>
    %32 = arith.mulf %31, %0 : vector<32x2xf32>
    %33 = arith.addf %24, %32 : vector<32x2xf32>
    %34 = vector.broadcast %26 : vector<32x1xf32> to vector<32x2xf32>
    %35 = arith.addf %33, %34 : vector<32x2xf32>
    %c0_7 = arith.constant 0 : index
    %c0_8 = arith.constant 0 : index
    %36 = vector.load %arg4[%c0_7, %c0_8] : memref<32x2xf32, #tpu.memory_space<vmem>>, vector<32x2xf32>
    tpu.vector_store %arg4[%c0_7, %c0_8], %35 {strides = array<i32>} : memref<32x2xf32, #tpu.memory_space<vmem>>, vector<32x2xf32>,
    return
  }
  func.func @transform_0(%arg0: i32) -> (i32, i32) {
    %c0_i32 = arith.constant 0 : i32
    %c0_i32_0 = arith.constant 0 : i32
    return %c0_i32, %arg0 : i32, i32
  }
  func.func @transform_1(%arg0: i32) -> (i32, i32) {
    %c0_i32 = arith.constant 0 : i32
    %c0_i32_0 = arith.constant 0 : i32
    %c0_i32_1 = arith.constant 0 : i32
    return %c0_i32, %c0_i32_0 : i32, i32
  }
  func.func @transform_2(%arg0: i32) -> (i32, i32) {
    %c0_i32 = arith.constant 0 : i32
    %c0_i32_0 = arith.constant 0 : i32
    %c0_i32_1 = arith.constant 0 : i32
    return %c0_i32, %c0_i32_0 : i32, i32
  }
  func.func @transform_3(%arg0: i32) -> (i32, i32) {
    %c0_i32 = arith.constant 0 : i32
    %c0_i32_0 = arith.constant 0 : i32
    return %c0_i32, %arg0 : i32, i32
  }
}

</mosaic_0001>

<llo_original>
// kernel: tpu_custom_call.1
$region0: #{tpu_custom_call.1}
  #allocation0 [shape = 'u32[]', space=smem, size = 0x4, offset = 0x4, fixed_abs, tag = 'smem constant byte address 0x4 - core index']
  #allocation1 [shape = 'u32[144,128]{1,0:T(1,128)}', space=vmem, size = 0x12000, scoped, tag = 'internal scratch']
  %s0 = inlined_call_operand.vmem [shape: f32[32,2], index: 0, kind: input, shape index: {}]
  %s1 = inlined_call_operand.vmem [shape: f32[32,3], index: 1, kind: input, shape index: {}]
  %s2 = inlined_call_operand.vmem [shape: f32[32,3], index: 2, kind: input, shape index: {}]
  %s3 = inlined_call_operand.vmem [shape: f32[32,2], index: 3, kind: output, shape index: {}]
  %s4 = sld [smem:[#allocation0]]
  $region22: #{tpu_custom_call.1} parent=0
    _
  %s6 = ssub.s32 1, %s4
  %s7 = scalar_select 0, %s6, %s4
  // Predicated region
  $region2: #{tpu_custom_call.1} parent=0 // pred_check
    _
  $region3: #{tpu_custom_call.1} parent=0 // pred_check_branch
    %9 = sbr.rel (0) target = $region5
  $region4: #{tpu_custom_call.1} parent=0 // pred_region
    _
  $region5: #{tpu_custom_call.1} parent=0 // pred_fallthru
    _
  // Predicated region
  $region6: #{tpu_custom_call.1} parent=0 // pred_check
    _
  $region7: #{tpu_custom_call.1} parent=0 // pred_check_branch
    %11 = sbr.rel (0) target = $region9
  $region8: #{tpu_custom_call.1} parent=0 // pred_region
    _
  $region9: #{tpu_custom_call.1} parent=0 // pred_fallthru
    _
  // Predicated region
  $region10: #{tpu_custom_call.1} parent=0 // pred_check
    _
  $region11: #{tpu_custom_call.1} parent=0 // pred_check_branch
    %13 = sbr.rel (0) target = $region13
  $region12: #{tpu_custom_call.1} parent=0 // pred_region
    _
  $region13: #{tpu_custom_call.1} parent=0 // pred_fallthru
    _
  %v14 = vld [vmem:[%s0] sm:$0xff]
  %v15 = vld [vmem:[%s0 + $0x8] sm:$0xff]
  %v16 = vld [vmem:[%s0 + $0x10] sm:$0xff]
  %v17 = vld [vmem:[%s0 + $0x18] sm:$0xff]
  %v18 = vld [vmem:[%s1] sm:$0xff]
  %v19 = vld [vmem:[%s1 + $0x8] sm:$0xff]
  %v20 = vld [vmem:[%s1 + $0x10] sm:$0xff]
  %v21 = vld [vmem:[%s1 + $0x18] sm:$0xff]
  %v22 = vld [vmem:[%s2] sm:$0xff]
  %v23 = vld [vmem:[%s2 + $0x8] sm:$0xff]
  %v24 = vld [vmem:[%s2 + $0x10] sm:$0xff]
  %v25 = vld [vmem:[%s2 + $0x18] sm:$0xff]
  %27 = vset.pattern.permute.xlu0 0
  %28 = vperm.xlu0 %27, %v18
  %v29 = vpop.permute.xlu0 %28
  %32 = vset.pattern.permute.xlu0 0
  %33 = vperm.xlu0 %32, %v19
  %v34 = vpop.permute.xlu0 %33
  %37 = vset.pattern.permute.xlu0 0
  %38 = vperm.xlu0 %37, %v20
  %v39 = vpop.permute.xlu0 %38
  %42 = vset.pattern.permute.xlu0 0
  %43 = vperm.xlu0 %42, %v21
  %v44 = vpop.permute.xlu0 %43
  %v46 = vmul.f32 %v14, %v29
  %v47 = vmul.f32 %v15, %v34
  %v48 = vmul.f32 %v16, %v39
  %v49 = vmul.f32 %v17, %v44
  %vm50 = vcmask 15360
  %v51 = vsel %vm50, %v46, 0.0
  %v52 = vsel %vm50, %v47, 0.0
  %v53 = vadd.f32 %v51, %v52
  %v54 = vsel %vm50, %v48, 0.0
  %v55 = vadd.f32 %v53, %v54
  %v56 = vsel %vm50, %v49, 0.0
  %v57 = vadd.f32 %v55, %v56
  %v58 = vrot.slane %v57, 4
  %v59 = vadd.f32 %v57, %v58
  %v60 = vrot.slane %v59, 2
  %v61 = vadd.f32 %v59, %v60
  %v62 = vrot.slane %v61, 1
  %v63 = vadd.f32 %v61, %v62
  %v64 = vmul.f32 %v63, %v14
  %v65 = vmul.f32 %v63, %v15
  %v66 = vmul.f32 %v63, %v16
  %v67 = vmul.f32 %v63, %v17
  %v68 = vadd.f32 %v14, %v64
  %v69 = vadd.f32 %v15, %v65
  %v70 = vadd.f32 %v16, %v66
  %v71 = vadd.f32 %v17, %v67
  %73 = vset.pattern.permute.xlu0 0
  %74 = vperm.xlu0 %73, %v22
  %v75 = vpop.permute.xlu0 %74
  %78 = vset.pattern.permute.xlu0 0
  %79 = vperm.xlu0 %78, %v23
  %v80 = vpop.permute.xlu0 %79
  %83 = vset.pattern.permute.xlu0 0
  %84 = vperm.xlu0 %83, %v24
  %v85 = vpop.permute.xlu0 %84
  %88 = vset.pattern.permute.xlu0 0
  %89 = vperm.xlu0 %88, %v25
  %v90 = vpop.permute.xlu0 %89
  %v92 = vadd.f32 %v68, %v75
  %v93 = vadd.f32 %v69, %v80
  %v94 = vadd.f32 %v70, %v85
  %v95 = vadd.f32 %v71, %v90
  %96 = vset.pattern.permute.xlu0 1
  %97 = vperm.xlu0 %96, %v18
  %v98 = vpop.permute.xlu0 %97
  %100 = vset.pattern.permute.xlu0 1
  %101 = vperm.xlu0 %100, %v19
  %v102 = vpop.permute.xlu0 %101
  %104 = vset.pattern.permute.xlu0 1
  %105 = vperm.xlu0 %104, %v20
  %v106 = vpop.permute.xlu0 %105
  %108 = vset.pattern.permute.xlu0 1
  %109 = vperm.xlu0 %108, %v21
  %v110 = vpop.permute.xlu0 %109
  %v112 = vmul.f32 %v92, %v98
  %v113 = vmul.f32 %v93, %v102
  %v114 = vmul.f32 %v94, %v106
  %v115 = vmul.f32 %v95, %v110
  %v116 = vsel %vm50, %v112, 0.0
  %v117 = vsel %vm50, %v113, 0.0
  %v118 = vadd.f32 %v116, %v117
  %v119 = vsel %vm50, %v114, 0.0
  %v120 = vadd.f32 %v118, %v119
  %v121 = vsel %vm50, %v115, 0.0
  %v122 = vadd.f32 %v120, %v121
  %v123 = vrot.slane %v122, 4
  %v124 = vadd.f32 %v122, %v123
  %v125 = vrot.slane %v124, 2
  %v126 = vadd.f32 %v124, %v125
  %v127 = vrot.slane %v126, 1
  %v128 = vadd.f32 %v126, %v127
  %v129 = vmul.f32 %v128, %v14
  %v130 = vmul.f32 %v128, %v15
  %v131 = vmul.f32 %v128, %v16
  %v132 = vmul.f32 %v128, %v17
  %v133 = vadd.f32 %v92, %v129
  %v134 = vadd.f32 %v93, %v130
  %v135 = vadd.f32 %v94, %v131
  %v136 = vadd.f32 %v95, %v132
  %137 = vset.pattern.permute.xlu0 1
  %138 = vperm.xlu0 %137, %v22
  %v139 = vpop.permute.xlu0 %138
  %141 = vset.pattern.permute.xlu0 1
  %142 = vperm.xlu0 %141, %v23
  %v143 = vpop.permute.xlu0 %142
  %145 = vset.pattern.permute.xlu0 1
  %146 = vperm.xlu0 %145, %v24
  %v147 = vpop.permute.xlu0 %146
  %149 = vset.pattern.permute.xlu0 1
  %150 = vperm.xlu0 %149, %v25
  %v151 = vpop.permute.xlu0 %150
  %v153 = vadd.f32 %v133, %v139
  %v154 = vadd.f32 %v134, %v143
  %v155 = vadd.f32 %v135, %v147
  %v156 = vadd.f32 %v136, %v151
  %157 = vset.pattern.permute.xlu0 2
  %158 = vperm.xlu0 %157, %v18
  %v159 = vpop.permute.xlu0 %158
  %161 = vset.pattern.permute.xlu0 2
  %162 = vperm.xlu0 %161, %v19
  %v163 = vpop.permute.xlu0 %162
  %165 = vset.pattern.permute.xlu0 2
  %166 = vperm.xlu0 %165, %v20
  %v167 = vpop.permute.xlu0 %166
  %169 = vset.pattern.permute.xlu0 2
  %170 = vperm.xlu0 %169, %v21
  %v171 = vpop.permute.xlu0 %170
  %v173 = vmul.f32 %v153, %v159
  %v174 = vmul.f32 %v154, %v163
  %v175 = vmul.f32 %v155, %v167
  %v176 = vmul.f32 %v156, %v171
  %v177 = vsel %vm50, %v173, 0.0
  %v178 = vsel %vm50, %v174, 0.0
  %v179 = vadd.f32 %v177, %v178
  %v180 = vsel %vm50, %v175, 0.0
  %v181 = vadd.f32 %v179, %v180
  %v182 = vsel %vm50, %v176, 0.0
  %v183 = vadd.f32 %v181, %v182
  %v184 = vrot.slane %v183, 4
  %v185 = vadd.f32 %v183, %v184
  %v186 = vrot.slane %v185, 2
  %v187 = vadd.f32 %v185, %v186
  %v188 = vrot.slane %v187, 1
  %v189 = vadd.f32 %v187, %v188
  %v190 = vmul.f32 %v189, %v14
  %v191 = vmul.f32 %v189, %v15
  %v192 = vmul.f32 %v189, %v16
  %v193 = vmul.f32 %v189, %v17
  %v194 = vadd.f32 %v153, %v190
  %v195 = vadd.f32 %v154, %v191
  %v196 = vadd.f32 %v155, %v192
  %v197 = vadd.f32 %v156, %v193
  %198 = vset.pattern.permute.xlu0 2
  %199 = vperm.xlu0 %198, %v22
  %v200 = vpop.permute.xlu0 %199
  %202 = vset.pattern.permute.xlu0 2
  %203 = vperm.xlu0 %202, %v23
  %v204 = vpop.permute.xlu0 %203
  %206 = vset.pattern.permute.xlu0 2
  %207 = vperm.xlu0 %206, %v24
  %v208 = vpop.permute.xlu0 %207
  %210 = vset.pattern.permute.xlu0 2
  %211 = vperm.xlu0 %210, %v25
  %v212 = vpop.permute.xlu0 %211
  %v214 = vadd.f32 %v194, %v200
  %v215 = vadd.f32 %v195, %v204
  %v216 = vadd.f32 %v196, %v208
  %v217 = vadd.f32 %v197, %v212
  %218 = vst.msk [vmem:[%s3] sm:$0xff] %vm50, %v214
  %219 = vst.msk [vmem:[%s3 + $0x8] sm:$0xff] %vm50, %v215
  %220 = vst.msk [vmem:[%s3 + $0x10] sm:$0xff] %vm50, %v216
  %221 = vst.msk [vmem:[%s3 + $0x18] sm:$0xff] %vm50, %v217
  // Predicated region
  $region14: #{tpu_custom_call.1} parent=0 // pred_check
    _
  $region15: #{tpu_custom_call.1} parent=0 // pred_check_branch
    %223 = sbr.rel (0) target = $region17
  $region16: #{tpu_custom_call.1} parent=0 // pred_region
    _
  $region17: #{tpu_custom_call.1} parent=0 // pred_fallthru
    _
  // Predicated region
  $region18: #{tpu_custom_call.1} parent=0 // pred_check
    _
  $region19: #{tpu_custom_call.1} parent=0 // pred_check_branch
    %225 = sbr.rel (0) target = $region21
  $region20: #{tpu_custom_call.1} parent=0 // pred_region
    _
  $region21: #{tpu_custom_call.1} parent=0 // pred_fallthru
    _

</llo_original>
